<compile_context>
chip_gen: v6e
topology: v6e:2x2x1
jax: 0.10.0
libtpu: 0.0.40
codegen_flags: <defaults>
</compile_context>

<pallas_src>
import functools

import jax
import jax.numpy as jnp
from jax.experimental import pallas as pl
from jax.experimental.pallas import tpu as pltpu  # noqa: F401  (CompilerParams if tiled later)

EMBED = 10  # fixed by the module: all projections map in_dim -> 10


def _taa_kernel(num_heads, head_dim, n_batch,
                xh_ref, xs_ref, xc_ref, w_ref, small_ref, o_ref):
    # xh/xs/xc: (rows, D) with rows = L*N flattened seq-major -> row r <-> (l=r//N, n=r%N).
    xh = xh_ref[...]
    xs = xs_ref[...]
    xc = xc_ref[...]
    rows = xh.shape[0]

    # Packed small parameters: rows 0..2 fused biases (q has the scale folded in),
    # rows 3..3+E-1 = Wo^T, row 3+E = bo.
    small = small_ref[...]
    bq = small[0:1]
    bk = small[1:2]
    bv = small[2:3]
    wo_t = small[3:3 + EMBED]
    bo = small[3 + EMBED:4 + EMBED]

    # Hoisted full-width in-projections (Linear(in_dim->10) already fused into them).
    q = jnp.dot(xh, w_ref[0], preferred_element_type=jnp.float32) + bq  # (rows, E), pre-scaled
    k = jnp.dot(xs, w_ref[1], preferred_element_type=jnp.float32) + bk
    v = jnp.dot(xc, w_ref[2], preferred_element_type=jnp.float32) + bv

    # Same-batch mask: batch id of row r is r % N (seq-major flatten). Cross-batch scores
    # get -inf, so one whole-rows softmax reproduces the per-batch attention exactly.
    ri = jax.lax.broadcasted_iota(jnp.int32, (rows, rows), 0)
    ci = jax.lax.broadcasted_iota(jnp.int32, (rows, rows), 1)
    same_batch = (ri % n_batch) == (ci % n_batch)

    ctx_parts = []
    for h in range(num_heads):  # static unroll; heads live in lanes -> static lane slices only
        sl = slice(h * head_dim, (h + 1) * head_dim)
        qh = q[:, sl]
        kh = k[:, sl]
        vh = v[:, sl]
        s = jnp.einsum('id,jd->ij', qh, kh, preferred_element_type=jnp.float32)  # (rows, rows)
        s = jnp.where(same_batch, s, -jnp.inf)
        s = s - jnp.max(s, axis=-1, keepdims=True)
        e = jnp.exp(s)
        p = e * pl.reciprocal(jnp.sum(e, axis=-1, keepdims=True), approx=True)
        ctx_parts.append(jnp.dot(p, vh, preferred_element_type=jnp.float32))     # (rows, hd)

    ctx = ctx_parts[0] if num_heads == 1 else jnp.concatenate(ctx_parts, axis=-1)  # (rows, E)

    out = jnp.dot(ctx, wo_t, preferred_element_type=jnp.float32) + bo
    o_ref[...] = out.astype(o_ref.dtype)  # single lane/sublane-clean 2D store


def pack_params(params, num_heads):
    """One-time parameter prep (call at init, NOT per forward call).

    Fuses Linear(in_dim->10) into the MHA in-projections:
        q = (x @ Wh^T + bh) @ Wq^T + bq == x @ (Wq @ Wh)^T + (Wq @ bh + bq)
    folds 1/sqrt(head_dim) into the Q path, pre-transposes everything for x @ w,
    and packs the results into two arrays so the kernel prologue is ~5 DMAs.
    """
    assert EMBED % num_heads == 0, "num_heads must divide embed_dim=10"
    head_dim = EMBED // num_heads
    scale = 1.0 / float(head_dim) ** 0.5

    w_in, b_in = params["in_proj_w"], params["in_proj_b"]
    wq, wk, wv = w_in[:EMBED], w_in[EMBED:2 * EMBED], w_in[2 * EMBED:]
    bq, bk, bv = b_in[:EMBED], b_in[EMBED:2 * EMBED], b_in[2 * EMBED:]

    aq = scale * (wq @ params["hyp_w"])
    bqf = scale * (wq @ params["hyp_b"] + bq)
    ak = wk @ params["star_w"]
    bkf = wk @ params["star_b"] + bk
    av = wv @ params["clique_w"]
    bvf = wv @ params["clique_b"] + bv

    w_qkv = jnp.stack([aq.T, ak.T, av.T]).astype(jnp.float32)          # (3, D, E)
    small = jnp.concatenate(
        [bqf[None, :], bkf[None, :], bvf[None, :],                     # rows 0..2
         params["out_w"].T,                                            # rows 3..3+E-1
         params["out_b"][None, :]],                                    # row 3+E
        axis=0).astype(jnp.float32)                                    # (E+4, E)
    return w_qkv, small


@functools.partial(jax.jit, static_argnames=("num_heads",))
def taa_spatial_pallas(x_hyp, x_star, x_clique, w_qkv, small, *, num_heads):
    """x_*: (L, N, in_dim) seq-first (PyTorch MHA convention). Returns (L, N, 10)."""
    head_dim = EMBED // num_heads
    L, N, D = x_hyp.shape
    rows = L * N

    # Seq-major leading-dim flatten: free (no transpose, no copy of substance).
    xh2 = x_hyp.reshape(rows, D)
    xs2 = x_star.reshape(rows, D)
    xc2 = x_clique.reshape(rows, D)

    out2 = pl.pallas_call(
        functools.partial(_taa_kernel, num_heads, head_dim, N),
        out_shape=jax.ShapeDtypeStruct((rows, EMBED), jnp.float32),
    )(xh2, xs2, xc2, w_qkv, small)

    return out2.reshape(L, N, EMBED)  # free leading-dim reshape back to seq-first


def taa_spatial_ref(x_hyp, x_star, x_clique, params, num_heads):
    """Plain-JAX reference mirroring PyTorch nn.MultiheadAttention forward."""
    head_dim = EMBED // num_heads
    L, N, _ = x_hyp.shape

    hyp = x_hyp @ params["hyp_w"].T + params["hyp_b"]
    star = x_star @ params["star_w"].T + params["star_b"]
    cli = x_clique @ params["clique_w"].T + params["clique_b"]

    w_in, b_in = params["in_proj_w"], params["in_proj_b"]
    q = hyp @ w_in[:EMBED].T + b_in[:EMBED]
    k = star @ w_in[EMBED:2 * EMBED].T + b_in[EMBED:2 * EMBED]
    v = cli @ w_in[2 * EMBED:].T + b_in[2 * EMBED:]

    def split(t):  # (L, N, E) -> (N, H, L, hd)
        return jnp.transpose(t.reshape(L, N, num_heads, head_dim), (1, 2, 0, 3))

    qh, kh, vh = split(q), split(k), split(v)
    scores = jnp.einsum("nhqd,nhkd->nhqk", qh, kh) / jnp.sqrt(jnp.float32(head_dim))
    attn = jax.nn.softmax(scores, axis=-1)
    ctx = jnp.einsum("nhqk,nhkd->nhqd", attn, vh)
    ctx = jnp.transpose(ctx, (2, 0, 1, 3)).reshape(L, N, EMBED)
    return ctx @ params["out_w"].T + params["out_b"]


def init_params(key, in_dim):
    ks = jax.random.split(key, 10)
    s = 0.1
    return {
        "hyp_w": s * jax.random.normal(ks[0], (EMBED, in_dim), jnp.float32),
        "hyp_b": s * jax.random.normal(ks[1], (EMBED,), jnp.float32),
        "star_w": s * jax.random.normal(ks[2], (EMBED, in_dim), jnp.float32),
        "star_b": s * jax.random.normal(ks[3], (EMBED,), jnp.float32),
        "clique_w": s * jax.random.normal(ks[4], (EMBED, in_dim), jnp.float32),
        "clique_b": s * jax.random.normal(ks[5], (EMBED,), jnp.float32),
        "in_proj_w": s * jax.random.normal(ks[6], (3 * EMBED, EMBED), jnp.float32),
        "in_proj_b": s * jax.random.normal(ks[7], (3 * EMBED,), jnp.float32),
        "out_w": s * jax.random.normal(ks[8], (EMBED, EMBED), jnp.float32),
        "out_b": s * jax.random.normal(ks[9], (EMBED,), jnp.float32),
    }


if __name__ == "__main__":
    in_dim = 16
    num_heads = 2      # must divide embed_dim=10
    L, N = 8, 2        # seq len, batch

    key = jax.random.PRNGKey(0)
    k1, k2, k3, kp = jax.random.split(key, 4)
    x_hyp = jax.random.normal(k1, (L, N, in_dim), jnp.float32)
    x_star = jax.random.normal(k2, (L, N, in_dim), jnp.float32)
    x_clique = jax.random.normal(k3, (L, N, in_dim), jnp.float32)
    params = init_params(kp, in_dim)

    # One-time cached parameter prep (not part of the per-call path).
    w_qkv, small = pack_params(params, num_heads)
    w_qkv, small = jax.block_until_ready(w_qkv), jax.block_until_ready(small)

    out = taa_spatial_pallas(x_hyp, x_star, x_clique, w_qkv, small, num_heads=num_heads)
    out = jax.block_until_ready(out)

    ref = taa_spatial_ref(x_hyp, x_star, x_clique, params, num_heads)
    assert out.shape == (L, N, EMBED)
    # Tolerance covers pl.reciprocal(..., approx=True) in the softmax denominator
    # (use approx=False for bit-tighter matching).
    assert jnp.allclose(out, ref, rtol=1e-2, atol=1e-2), "mismatch vs JAX reference"

    print("KERNEL_OK")
</pallas_src>

<mosaic_0001>
module attributes {stable_mosaic.version = 11 : i64} {
  func.func @_taa_kernel(%arg0: memref<16x16xf32, #tpu.memory_space<vmem>>, %arg1: memref<16x16xf32, #tpu.memory_space<vmem>>, %arg2: memref<16x16xf32, #tpu.memory_space<vmem>>, %arg3: memref<3x16x10xf32, #tpu.memory_space<vmem>>, %arg4: memref<14x10xf32, #tpu.memory_space<vmem>>, %arg5: memref<16x10xf32, #tpu.memory_space<vmem>>) attributes {dimension_semantics = [], scalar_prefetch = 0 : i64, scratch_operands = 0 : i64, tpu.core_type = #tpu.core_type<tc>} {
    %c0 = arith.constant 0 : index
    %c0_0 = arith.constant 0 : index
    %0 = vector.load %arg0[%c0, %c0_0] : memref<16x16xf32, #tpu.memory_space<vmem>>, vector<16x16xf32>
    %c0_1 = arith.constant 0 : index
    %c0_2 = arith.constant 0 : index
    %1 = vector.load %arg1[%c0_1, %c0_2] : memref<16x16xf32, #tpu.memory_space<vmem>>, vector<16x16xf32>
    %c0_3 = arith.constant 0 : index
    %c0_4 = arith.constant 0 : index
    %2 = vector.load %arg2[%c0_3, %c0_4] : memref<16x16xf32, #tpu.memory_space<vmem>>, vector<16x16xf32>
    %c0_5 = arith.constant 0 : index
    %c0_6 = arith.constant 0 : index
    %3 = vector.load %arg4[%c0_5, %c0_6] : memref<14x10xf32, #tpu.memory_space<vmem>>, vector<14x10xf32>
    %4 = vector.extract_strided_slice %3 {offsets = [0, 0], sizes = [1, 10], strides = [1, 1]} : vector<14x10xf32> to vector<1x10xf32>
    %5 = vector.extract_strided_slice %3 {offsets = [1, 0], sizes = [1, 10], strides = [1, 1]} : vector<14x10xf32> to vector<1x10xf32>
    %6 = vector.extract_strided_slice %3 {offsets = [2, 0], sizes = [1, 10], strides = [1, 1]} : vector<14x10xf32> to vector<1x10xf32>
    %7 = vector.extract_strided_slice %3 {offsets = [3, 0], sizes = [10, 10], strides = [1, 1]} : vector<14x10xf32> to vector<10x10xf32>
    %8 = vector.extract_strided_slice %3 {offsets = [13, 0], sizes = [1, 10], strides = [1, 1]} : vector<14x10xf32> to vector<1x10xf32>
    %c0_7 = arith.constant 0 : index
    %c0_8 = arith.constant 0 : index
    %c0_9 = arith.constant 0 : index
    %9 = vector.load %arg3[%c0_7, %c0_8, %c0_9] : memref<3x16x10xf32, #tpu.memory_space<vmem>>, vector<1x16x10xf32>
    %10 = vector.shape_cast %9 : vector<1x16x10xf32> to vector<16x10xf32>
    %cst = arith.constant dense<0.000000e+00> : vector<16x10xf32>
    %11 = tpu.matmul %0, %10, %cst {dimension_numbers = #tpu.dot_dimension_numbers<[1], [0], [0], [1], [0, 0, 1, 1], [], []>} : vector<16x16xf32>, vector<16x10xf32>, vector<16x10xf32> -> vector<16x10xf32>
    %12 = vector.broadcast %4 : vector<1x10xf32> to vector<16x10xf32>
    %13 = arith.addf %11, %12 : vector<16x10xf32>
    %c1 = arith.constant 1 : index
    %c0_10 = arith.constant 0 : index
    %c0_11 = arith.constant 0 : index
    %14 = vector.load %arg3[%c1, %c0_10, %c0_11] : memref<3x16x10xf32, #tpu.memory_space<vmem>>, vector<1x16x10xf32>
    %15 = vector.shape_cast %14 : vector<1x16x10xf32> to vector<16x10xf32>
    %cst_12 = arith.constant dense<0.000000e+00> : vector<16x10xf32>
    %16 = tpu.matmul %1, %15, %cst_12 {dimension_numbers = #tpu.dot_dimension_numbers<[1], [0], [0], [1], [0, 0, 1, 1], [], []>} : vector<16x16xf32>, vector<16x10xf32>, vector<16x10xf32> -> vector<16x10xf32>
    %17 = vector.broadcast %5 : vector<1x10xf32> to vector<16x10xf32>
    %18 = arith.addf %16, %17 : vector<16x10xf32>
    %c2 = arith.constant 2 : index
    %c0_13 = arith.constant 0 : index
    %c0_14 = arith.constant 0 : index
    %19 = vector.load %arg3[%c2, %c0_13, %c0_14] : memref<3x16x10xf32, #tpu.memory_space<vmem>>, vector<1x16x10xf32>
    %20 = vector.shape_cast %19 : vector<1x16x10xf32> to vector<16x10xf32>
    %cst_15 = arith.constant dense<0.000000e+00> : vector<16x10xf32>
    %21 = tpu.matmul %2, %20, %cst_15 {dimension_numbers = #tpu.dot_dimension_numbers<[1], [0], [0], [1], [0, 0, 1, 1], [], []>} : vector<16x16xf32>, vector<16x10xf32>, vector<16x10xf32> -> vector<16x10xf32>
    %22 = vector.broadcast %6 : vector<1x10xf32> to vector<16x10xf32>
    %23 = arith.addf %21, %22 : vector<16x10xf32>
    %24 = tpu.iota {dimensions = array<i32: 0>} : vector<16x16xi32>
    %25 = tpu.iota {dimensions = array<i32: 1>} : vector<16x16xi32>
    %c2_i32 = arith.constant 2 : i32
    %c0_i32 = arith.constant 0 : i32
    %26 = arith.cmpi eq, %c2_i32, %c0_i32 : i32
    %c1_i32 = arith.constant 1 : i32
    %27 = arith.select %26, %c1_i32, %c2_i32 : i32
    %28 = vector.broadcast %27 : i32 to vector<16x16xi32>
    %29 = arith.remsi %24, %28 : vector<16x16xi32>
    %c0_i32_16 = arith.constant 0 : i32
    %30 = vector.broadcast %c0_i32_16 : i32 to vector<16x16xi32>
    %31 = arith.cmpi ne, %29, %30 : vector<16x16xi32>
    %c0_i32_17 = arith.constant 0 : i32
    %32 = vector.broadcast %c0_i32_17 : i32 to vector<16x16xi32>
    %33 = arith.cmpi slt, %29, %32 : vector<16x16xi32>
    %c0_i32_18 = arith.constant 0 : i32
    %34 = arith.cmpi slt, %27, %c0_i32_18 : i32
    %35 = vector.broadcast %34 : i1 to vector<16x16xi1>
    %36 = vector.broadcast %35 : vector<16x16xi1> to vector<16x16xi1>
    %37 = arith.xori %33, %36 : vector<16x16xi1>
    %38 = arith.andi %37, %31 : vector<16x16xi1>
    %39 = vector.broadcast %27 : i32 to vector<16x16xi32>
    %40 = arith.addi %29, %39 : vector<16x16xi32>
    %41 = arith.select %38, %40, %29 : vector<16x16xi1>, vector<16x16xi32>
    %c2_i32_19 = arith.constant 2 : i32
    %c0_i32_20 = arith.constant 0 : i32
    %42 = arith.cmpi eq, %c2_i32_19, %c0_i32_20 : i32
    %c1_i32_21 = arith.constant 1 : i32
    %43 = arith.select %42, %c1_i32_21, %c2_i32_19 : i32
    %44 = vector.broadcast %43 : i32 to vector<16x16xi32>
    %45 = arith.remsi %25, %44 : vector<16x16xi32>
    %c0_i32_22 = arith.constant 0 : i32
    %46 = vector.broadcast %c0_i32_22 : i32 to vector<16x16xi32>
    %47 = arith.cmpi ne, %45, %46 : vector<16x16xi32>
    %c0_i32_23 = arith.constant 0 : i32
    %48 = vector.broadcast %c0_i32_23 : i32 to vector<16x16xi32>
    %49 = arith.cmpi slt, %45, %48 : vector<16x16xi32>
    %c0_i32_24 = arith.constant 0 : i32
    %50 = arith.cmpi slt, %43, %c0_i32_24 : i32
    %51 = vector.broadcast %50 : i1 to vector<16x16xi1>
    %52 = vector.broadcast %51 : vector<16x16xi1> to vector<16x16xi1>
    %53 = arith.xori %49, %52 : vector<16x16xi1>
    %54 = arith.andi %53, %47 : vector<16x16xi1>
    %55 = vector.broadcast %43 : i32 to vector<16x16xi32>
    %56 = arith.addi %45, %55 : vector<16x16xi32>
    %57 = arith.select %54, %56, %45 : vector<16x16xi1>, vector<16x16xi32>
    %58 = arith.cmpi eq, %41, %57 : vector<16x16xi32>
    %59 = vector.extract_strided_slice %13 {offsets = [0, 0], sizes = [16, 5], strides = [1, 1]} : vector<16x10xf32> to vector<16x5xf32>
    %60 = vector.extract_strided_slice %18 {offsets = [0, 0], sizes = [16, 5], strides = [1, 1]} : vector<16x10xf32> to vector<16x5xf32>
    %61 = vector.extract_strided_slice %23 {offsets = [0, 0], sizes = [16, 5], strides = [1, 1]} : vector<16x10xf32> to vector<16x5xf32>
    "tpu.trace_start"() <{level = 10 : i32, message = "id,jd->ij"}> : () -> ()
    %cst_25 = arith.constant dense<0.000000e+00> : vector<16x16xf32>
    %62 = tpu.matmul %59, %60, %cst_25 {dimension_numbers = #tpu.dot_dimension_numbers<[1], [1], [0], [0], [0, 0, 1, 0], [], []>} : vector<16x5xf32>, vector<16x5xf32>, vector<16x16xf32> -> vector<16x16xf32>
    %cst_26 = arith.constant 0xFF800000 : f32
    "tpu.trace_stop"() : () -> ()
    %63 = vector.broadcast %cst_26 : f32 to vector<16x16xf32>
    %64 = arith.select %58, %62, %63 : vector<16x16xi1>, vector<16x16xf32>
    %cst_27 = arith.constant dense<0xFF800000> : vector<16xf32>
    %65 = vector.multi_reduction <maximumf>, %64, %cst_27 [1] : vector<16x16xf32> to vector<16xf32>
    %66 = vector.shape_cast %65 : vector<16xf32> to vector<16x1xf32>
    %67 = vector.broadcast %66 : vector<16x1xf32> to vector<16x16xf32>
    %68 = arith.subf %64, %67 : vector<16x16xf32>
    %69 = math.exp %68 : vector<16x16xf32>
    %cst_28 = arith.constant dense<0.000000e+00> : vector<16xf32>
    %70 = vector.multi_reduction <add>, %69, %cst_28 [1] : vector<16x16xf32> to vector<16xf32>
    %71 = vector.shape_cast %70 : vector<16xf32> to vector<16x1xf32>
    %72 = tpu.reciprocal %71 {approx = true} : vector<16x1xf32> -> vector<16x1xf32>
    %73 = vector.broadcast %72 : vector<16x1xf32> to vector<16x16xf32>
    %74 = arith.mulf %69, %73 : vector<16x16xf32>
    %cst_29 = arith.constant dense<0.000000e+00> : vector<16x5xf32>
    %75 = tpu.matmul %74, %61, %cst_29 {dimension_numbers = #tpu.dot_dimension_numbers<[1], [0], [0], [1], [0, 0, 1, 1], [], []>} : vector<16x16xf32>, vector<16x5xf32>, vector<16x5xf32> -> vector<16x5xf32>
    %76 = vector.extract_strided_slice %13 {offsets = [0, 5], sizes = [16, 5], strides = [1, 1]} : vector<16x10xf32> to vector<16x5xf32>
    %77 = vector.extract_strided_slice %18 {offsets = [0, 5], sizes = [16, 5], strides = [1, 1]} : vector<16x10xf32> to vector<16x5xf32>
    %78 = vector.extract_strided_slice %23 {offsets = [0, 5], sizes = [16, 5], strides = [1, 1]} : vector<16x10xf32> to vector<16x5xf32>
    "tpu.trace_start"() <{level = 10 : i32, message = "id,jd->ij"}> : () -> ()
    %cst_30 = arith.constant dense<0.000000e+00> : vector<16x16xf32>
    %79 = tpu.matmul %76, %77, %cst_30 {dimension_numbers = #tpu.dot_dimension_numbers<[1], [1], [0], [0], [0, 0, 1, 0], [], []>} : vector<16x5xf32>, vector<16x5xf32>, vector<16x16xf32> -> vector<16x16xf32>
    %cst_31 = arith.constant 0xFF800000 : f32
    "tpu.trace_stop"() : () -> ()
    %80 = vector.broadcast %cst_31 : f32 to vector<16x16xf32>
    %81 = arith.select %58, %79, %80 : vector<16x16xi1>, vector<16x16xf32>
    %cst_32 = arith.constant dense<0xFF800000> : vector<16xf32>
    %82 = vector.multi_reduction <maximumf>, %81, %cst_32 [1] : vector<16x16xf32> to vector<16xf32>
    %83 = vector.shape_cast %82 : vector<16xf32> to vector<16x1xf32>
    %84 = vector.broadcast %83 : vector<16x1xf32> to vector<16x16xf32>
    %85 = arith.subf %81, %84 : vector<16x16xf32>
    %86 = math.exp %85 : vector<16x16xf32>
    %cst_33 = arith.constant dense<0.000000e+00> : vector<16xf32>
    %87 = vector.multi_reduction <add>, %86, %cst_33 [1] : vector<16x16xf32> to vector<16xf32>
    %88 = vector.shape_cast %87 : vector<16xf32> to vector<16x1xf32>
    %89 = tpu.reciprocal %88 {approx = true} : vector<16x1xf32> -> vector<16x1xf32>
    %90 = vector.broadcast %89 : vector<16x1xf32> to vector<16x16xf32>
    %91 = arith.mulf %86, %90 : vector<16x16xf32>
    %cst_34 = arith.constant dense<0.000000e+00> : vector<16x5xf32>
    %92 = tpu.matmul %91, %78, %cst_34 {dimension_numbers = #tpu.dot_dimension_numbers<[1], [0], [0], [1], [0, 0, 1, 1], [], []>} : vector<16x16xf32>, vector<16x5xf32>, vector<16x5xf32> -> vector<16x5xf32>
    %93 = tpu.concatenate %75, %92 in 1 : vector<16x5xf32>, vector<16x5xf32> -> vector<16x10xf32>
    %cst_35 = arith.constant dense<0.000000e+00> : vector<16x10xf32>
    %94 = tpu.matmul %93, %7, %cst_35 {dimension_numbers = #tpu.dot_dimension_numbers<[1], [0], [0], [1], [0, 0, 1, 1], [], []>} : vector<16x10xf32>, vector<10x10xf32>, vector<16x10xf32> -> vector<16x10xf32>
    %95 = vector.broadcast %8 : vector<1x10xf32> to vector<16x10xf32>
    %96 = arith.addf %94, %95 : vector<16x10xf32>
    %c0_36 = arith.constant 0 : index
    %c0_37 = arith.constant 0 : index
    %97 = vector.load %arg5[%c0_36, %c0_37] : memref<16x10xf32, #tpu.memory_space<vmem>>, vector<16x10xf32>
    tpu.vector_store %arg5[%c0_36, %c0_37], %96 {strides = array<i32>} : memref<16x10xf32, #tpu.memory_space<vmem>>, vector<16x10xf32>,
    return
  }
}

</mosaic_0001>

<llo_original>
// kernel: taa_spatial_pallas.1
$region0: #{taa_spatial_pallas.1}
  #allocation0 [shape = 'u32[]', space=smem, size = 0x4, offset = 0x4, fixed_abs, tag = 'smem constant byte address 0x4 - core index']
  #allocation1 [shape = 'u32[144,128]{1,0:T(1,128)}', space=vmem, size = 0x12000, scoped, tag = 'internal scratch']
  %s0 = inlined_call_operand.vmem [shape: f32[16,16], index: 0, kind: input, shape index: {}]
  %s1 = inlined_call_operand.vmem [shape: f32[16,16], index: 1, kind: input, shape index: {}]
  %s2 = inlined_call_operand.vmem [shape: f32[16,16], index: 2, kind: input, shape index: {}]
  %s3 = inlined_call_operand.vmem [shape: f32[3,16,10], index: 3, kind: input, shape index: {}]
  %s4 = inlined_call_operand.vmem [shape: f32[14,10], index: 4, kind: input, shape index: {}]
  %s5 = inlined_call_operand.hbm [shape: f32[16,10], index: 5, kind: output, shape index: {}]
  %s6 = sld [smem:[#allocation0]]
  $region30: #{taa_spatial_pallas.1} parent=0
    _
  %s8 = ssub.s32 1, %s6
  %s9 = scalar_select 0, %s8, %s6
  $region1: #{taa_spatial_pallas.1} parent=0
    #allocation2 [shape = 'u8[8192]{0}', space=vmem, size = 0x2000, scoped, tag = 'output window, operand 0, single buffered']
    #allocation3 [shape = 's32[1]{0}', space=sflag, size = 0x4, scoped, tag = 'scoped memory for taa_spatial_pallas.1']
    %10 = vsyncpa [#allocation3], 0
    // Predicated region
    $region2: #{taa_spatial_pallas.1} parent=1 // pred_check
      _
    $region3: #{taa_spatial_pallas.1} parent=1 // pred_check_branch
      %12 = sbr.rel (0) target = $region5
    $region4: #{taa_spatial_pallas.1} parent=1 // pred_region
      _
    $region5: #{taa_spatial_pallas.1} parent=1 // pred_fallthru
      _
    // Predicated region
    $region6: #{taa_spatial_pallas.1} parent=1 // pred_check
      _
    $region7: #{taa_spatial_pallas.1} parent=1 // pred_check_branch
      %14 = sbr.rel (0) target = $region9
    $region8: #{taa_spatial_pallas.1} parent=1 // pred_region
      _
    $region9: #{taa_spatial_pallas.1} parent=1 // pred_fallthru
      _
    // Predicated region
    $region10: #{taa_spatial_pallas.1} parent=1 // pred_check
      _
    $region11: #{taa_spatial_pallas.1} parent=1 // pred_check_branch
      %16 = sbr.rel (0) target = $region13
    $region12: #{taa_spatial_pallas.1} parent=1 // pred_region
      _
    $region13: #{taa_spatial_pallas.1} parent=1 // pred_fallthru
      _
    // Predicated region
    $region14: #{taa_spatial_pallas.1} parent=1 // pred_check
      _
    $region15: #{taa_spatial_pallas.1} parent=1 // pred_check_branch
      %18 = sbr.rel (0) target = $region17
    $region16: #{taa_spatial_pallas.1} parent=1 // pred_region
      _
    $region17: #{taa_spatial_pallas.1} parent=1 // pred_fallthru
      _
    // Predicated region
    $region18: #{taa_spatial_pallas.1} parent=1 // pred_check
      _
    $region19: #{taa_spatial_pallas.1} parent=1 // pred_check_branch
      %20 = sbr.rel (0) target = $region21
    $region20: #{taa_spatial_pallas.1} parent=1 // pred_region
      _
    $region21: #{taa_spatial_pallas.1} parent=1 // pred_fallthru
      _
    %v21 = vld [vmem:[%s0] sm:$0xff]
    %v22 = vld [vmem:[%s0 + $0x8] sm:$0xff]
    %v23 = vld [vmem:[%s1] sm:$0xff]
    %v24 = vld [vmem:[%s1 + $0x8] sm:$0xff]
    %v25 = vld [vmem:[%s2] sm:$0xff]
    %v26 = vld [vmem:[%s2 + $0x8] sm:$0xff]
    %v27 = vld [vmem:[%s4] sm:$0xff]
    %v28 = vld [vmem:[%s4 + $0x8] sm:$0x3f]
    %v29 = vld [vmem:[%s3] sm:$0xff]
    %v30 = vld [vmem:[%s3 + $0x8] sm:$0xff]
    %v31 = vlaneseq
    %v32 = vshrl.u32 %v31, 7
    %v33 = vsub.s32 0, %v32
    %v34 = vrot.slane %v27, %v33
    %vm35 = vcmask 130048
    %v37 = vsel %vm35, %v21, 0
    %v40 = vsel %vm35, %v22, 0
    %42 = vmatprep.subr.mxu0 0.0
    %43 = vmatpush1.msra.mxu0 0.0
    %44 = vmatprep.subr.mxu0 0.0
    %45 = vmatpush1.msra.mxu0 0.0
    %46 = vmatprep.subr.mxu0 0.0
    %47 = vmatpush1.msra.mxu0 0.0
    %48 = vmatprep.subr.mxu0 0.0
    %49 = vmatpush1.msra.mxu0 0.0
    %50 = vmatprep.subr.mxu0 0.0
    %51 = vmatpush1.msra.mxu0 0.0
    %52 = vmatprep.subr.mxu0 0.0
    %53 = vmatpush1.msra.mxu0 0.0
    %54 = vmatprep.subr.mxu0 0.0
    %55 = vmatpush1.msra.mxu0 0.0
    %56 = vmatprep.subr.mxu0 0.0
    %57 = vmatpush1.msra.mxu0 0.0
    %58 = vmatprep.subr.mxu0 0.0
    %59 = vmatpush1.msra.mxu0 0.0
    %60 = vmatprep.subr.mxu0 0.0
    %61 = vmatpush1.msra.mxu0 0.0
    %62 = vmatprep.subr.mxu0 0.0
    %63 = vmatpush1.msra.mxu0 0.0
    %64 = vmatprep.subr.mxu0 0.0
    %65 = vmatpush1.msra.mxu0 0.0
    %66 = vmatprep.subr.mxu0 0.0
    %67 = vmatpush1.msra.mxu0 0.0
    %68 = vmatprep.subr.mxu0 0.0
    %69 = vmatpush1.msra.mxu0 0.0
    %70 = vmatprep.subr.mxu0 0.0
    %71 = vmatpush1.msra.mxu0 %v30
    %72 = vmatprep.subr.mxu0 0.0
    %73 = vmatpush1.msra.mxu0 %v29
    %74 = vmatprep.subr.mxu0 0.0
    %75 = vmatpush2.msra.mxu0 0.0
    %76 = vmatprep.subr.mxu0 0.0
    %77 = vmatpush2.msra.mxu0 0.0
    %78 = vmatprep.subr.mxu0 0.0
    %79 = vmatpush2.msra.mxu0 0.0
    %80 = vmatprep.subr.mxu0 0.0
    %81 = vmatpush2.msra.mxu0 0.0
    %82 = vmatprep.subr.mxu0 0.0
    %83 = vmatpush2.msra.mxu0 0.0
    %84 = vmatprep.subr.mxu0 0.0
    %85 = vmatpush2.msra.mxu0 0.0
    %86 = vmatprep.subr.mxu0 0.0
    %87 = vmatpush2.msra.mxu0 0.0
    %88 = vmatprep.subr.mxu0 0.0
    %89 = vmatpush2.msra.mxu0 0.0
    %90 = vmatprep.subr.mxu0 0.0
    %91 = vmatpush2.msra.mxu0 0.0
    %92 = vmatprep.subr.mxu0 0.0
    %93 = vmatpush2.msra.mxu0 0.0
    %94 = vmatprep.subr.mxu0 0.0
    %95 = vmatpush2.msra.mxu0 0.0
    %96 = vmatprep.subr.mxu0 0.0
    %97 = vmatpush2.msra.mxu0 0.0
    %98 = vmatprep.subr.mxu0 0.0
    %99 = vmatpush2.msra.mxu0 0.0
    %100 = vmatprep.subr.mxu0 0.0
    %101 = vmatpush2.msra.mxu0 0.0
    %102 = vmatprep.subr.mxu0 0.0
    %103 = vmatpush2.msra.mxu0 0.0
    %104 = vmatprep.subr.mxu0 0.0
    %105 = vmatpush2.msra.mxu0 0.0
    %106 = vmatprep.mubr.f32.mxu0 0.0
    %107 = vmatmul.mubr.f32.gmra.mxu0 %v37
    %v108 = vpop.f32.mrf.mxu0
    %v109 = vadd.f32 %v34, %v108
    %v110 = vpop.f32.mrf.mxu0
    %111 = vmatprep.mubr.f32.mxu0 0.0
    %112 = vmatmul.mubr.f32.gmra.mxu0 %v40
    %v113 = vpop.f32.mrf.mxu0
    %v114 = vadd.f32 %v34, %v113
    %v115 = vpop.f32.mrf.mxu0
    %116 = vdwg.mxu0
    %s117 = scalar_lea.vmem %s3, 16
    %v118 = vld [vmem:[%s117] sm:$0xff]
    %v119 = vld [vmem:[%s117 + $0x8] sm:$0xff]
    %v120 = vlaneseq
    %v121 = vshrl.u32 %v120, 7
    %v122 = vsub.s32 1, %v121
    %v123 = vrot.slane %v27, %v122
    %v125 = vsel %vm35, %v23, 0
    %v128 = vsel %vm35, %v24, 0
    %130 = vmatprep.subr.mxu0 0.0
    %131 = vmatpush1.msra.mxu0 0.0
    %132 = vmatprep.subr.mxu0 0.0
    %133 = vmatpush1.msra.mxu0 0.0
    %134 = vmatprep.subr.mxu0 0.0
    %135 = vmatpush1.msra.mxu0 0.0
    %136 = vmatprep.subr.mxu0 0.0
    %137 = vmatpush1.msra.mxu0 0.0
    %138 = vmatprep.subr.mxu0 0.0
    %139 = vmatpush1.msra.mxu0 0.0
    %140 = vmatprep.subr.mxu0 0.0
    %141 = vmatpush1.msra.mxu0 0.0
    %142 = vmatprep.subr.mxu0 0.0
    %143 = vmatpush1.msra.mxu0 0.0
    %144 = vmatprep.subr.mxu0 0.0
    %145 = vmatpush1.msra.mxu0 0.0
    %146 = vmatprep.subr.mxu0 0.0
    %147 = vmatpush1.msra.mxu0 0.0
    %148 = vmatprep.subr.mxu0 0.0
    %149 = vmatpush1.msra.mxu0 0.0
    %150 = vmatprep.subr.mxu0 0.0
    %151 = vmatpush1.msra.mxu0 0.0
    %152 = vmatprep.subr.mxu0 0.0
    %153 = vmatpush1.msra.mxu0 0.0
    %154 = vmatprep.subr.mxu0 0.0
    %155 = vmatpush1.msra.mxu0 0.0
    %156 = vmatprep.subr.mxu0 0.0
    %157 = vmatpush1.msra.mxu0 0.0
    %158 = vmatprep.subr.mxu0 0.0
    %159 = vmatpush1.msra.mxu0 %v119
    %160 = vmatprep.subr.mxu0 0.0
    %161 = vmatpush1.msra.mxu0 %v118
    %162 = vmatprep.subr.mxu0 0.0
    %163 = vmatpush2.msra.mxu0 0.0
    %164 = vmatprep.subr.mxu0 0.0
    %165 = vmatpush2.msra.mxu0 0.0
    %166 = vmatprep.subr.mxu0 0.0
    %167 = vmatpush2.msra.mxu0 0.0
    %168 = vmatprep.subr.mxu0 0.0
    %169 = vmatpush2.msra.mxu0 0.0
    %170 = vmatprep.subr.mxu0 0.0
    %171 = vmatpush2.msra.mxu0 0.0
    %172 = vmatprep.subr.mxu0 0.0
    %173 = vmatpush2.msra.mxu0 0.0
    %174 = vmatprep.subr.mxu0 0.0
    %175 = vmatpush2.msra.mxu0 0.0
    %176 = vmatprep.subr.mxu0 0.0
    %177 = vmatpush2.msra.mxu0 0.0
    %178 = vmatprep.subr.mxu0 0.0
    %179 = vmatpush2.msra.mxu0 0.0
    %180 = vmatprep.subr.mxu0 0.0
    %181 = vmatpush2.msra.mxu0 0.0
    %182 = vmatprep.subr.mxu0 0.0
    %183 = vmatpush2.msra.mxu0 0.0
    %184 = vmatprep.subr.mxu0 0.0
    %185 = vmatpush2.msra.mxu0 0.0
    %186 = vmatprep.subr.mxu0 0.0
    %187 = vmatpush2.msra.mxu0 0.0
    %188 = vmatprep.subr.mxu0 0.0
    %189 = vmatpush2.msra.mxu0 0.0
    %190 = vmatprep.subr.mxu0 0.0
    %191 = vmatpush2.msra.mxu0 0.0
    %192 = vmatprep.subr.mxu0 0.0
    %193 = vmatpush2.msra.mxu0 0.0
    %194 = vmatprep.mubr.f32.mxu0 0.0
    %195 = vmatmul.mubr.f32.gmra.mxu0 %v125
    %v196 = vpop.f32.mrf.mxu0
    %v197 = vadd.f32 %v123, %v196
    %v198 = vpop.f32.mrf.mxu0
    %199 = vmatprep.mubr.f32.mxu0 0.0
    %200 = vmatmul.mubr.f32.gmra.mxu0 %v128
    %v201 = vpop.f32.mrf.mxu0
    %v202 = vadd.f32 %v123, %v201
    %v203 = vpop.f32.mrf.mxu0
    %204 = vdwg.mxu0
    %s205 = scalar_lea.vmem %s3, 32
    %v206 = vld [vmem:[%s205] sm:$0xff]
    %v207 = vld [vmem:[%s205 + $0x8] sm:$0xff]
    %v208 = vlaneseq
    %v209 = vshrl.u32 %v208, 7
    %v210 = vsub.s32 2, %v209
    %v211 = vrot.slane %v27, %v210
    %v213 = vsel %vm35, %v25, 0
    %v216 = vsel %vm35, %v26, 0
    %218 = vmatprep.subr.mxu0 0.0
    %219 = vmatpush1.msra.mxu0 0.0
    %220 = vmatprep.subr.mxu0 0.0
    %221 = vmatpush1.msra.mxu0 0.0
    %222 = vmatprep.subr.mxu0 0.0
    %223 = vmatpush1.msra.mxu0 0.0
    %224 = vmatprep.subr.mxu0 0.0
    %225 = vmatpush1.msra.mxu0 0.0
    %226 = vmatprep.subr.mxu0 0.0
    %227 = vmatpush1.msra.mxu0 0.0
    %228 = vmatprep.subr.mxu0 0.0
    %229 = vmatpush1.msra.mxu0 0.0
    %230 = vmatprep.subr.mxu0 0.0
    %231 = vmatpush1.msra.mxu0 0.0
    %232 = vmatprep.subr.mxu0 0.0
    %233 = vmatpush1.msra.mxu0 0.0
    %234 = vmatprep.subr.mxu0 0.0
    %235 = vmatpush1.msra.mxu0 0.0
    %236 = vmatprep.subr.mxu0 0.0
    %237 = vmatpush1.msra.mxu0 0.0
    %238 = vmatprep.subr.mxu0 0.0
    %239 = vmatpush1.msra.mxu0 0.0
    %240 = vmatprep.subr.mxu0 0.0
    %241 = vmatpush1.msra.mxu0 0.0
    %242 = vmatprep.subr.mxu0 0.0
    %243 = vmatpush1.msra.mxu0 0.0
    %244 = vmatprep.subr.mxu0 0.0
    %245 = vmatpush1.msra.mxu0 0.0
    %246 = vmatprep.subr.mxu0 0.0
    %247 = vmatpush1.msra.mxu0 %v207
    %248 = vmatprep.subr.mxu0 0.0
    %249 = vmatpush1.msra.mxu0 %v206
    %250 = vmatprep.subr.mxu0 0.0
    %251 = vmatpush2.msra.mxu0 0.0
    %252 = vmatprep.subr.mxu0 0.0
    %253 = vmatpush2.msra.mxu0 0.0
    %254 = vmatprep.subr.mxu0 0.0
    %255 = vmatpush2.msra.mxu0 0.0
    %256 = vmatprep.subr.mxu0 0.0
    %257 = vmatpush2.msra.mxu0 0.0
    %258 = vmatprep.subr.mxu0 0.0
    %259 = vmatpush2.msra.mxu0 0.0
    %260 = vmatprep.subr.mxu0 0.0
    %261 = vmatpush2.msra.mxu0 0.0
    %262 = vmatprep.subr.mxu0 0.0
    %263 = vmatpush2.msra.mxu0 0.0
    %264 = vmatprep.subr.mxu0 0.0
    %265 = vmatpush2.msra.mxu0 0.0
    %266 = vmatprep.subr.mxu0 0.0
    %267 = vmatpush2.msra.mxu0 0.0
    %268 = vmatprep.subr.mxu0 0.0
    %269 = vmatpush2.msra.mxu0 0.0
    %270 = vmatprep.subr.mxu0 0.0
    %271 = vmatpush2.msra.mxu0 0.0
    %272 = vmatprep.subr.mxu0 0.0
    %273 = vmatpush2.msra.mxu0 0.0
    %274 = vmatprep.subr.mxu0 0.0
    %275 = vmatpush2.msra.mxu0 0.0
    %276 = vmatprep.subr.mxu0 0.0
    %277 = vmatpush2.msra.mxu0 0.0
    %278 = vmatprep.subr.mxu0 0.0
    %279 = vmatpush2.msra.mxu0 0.0
    %280 = vmatprep.subr.mxu0 0.0
    %281 = vmatpush2.msra.mxu0 0.0
    %282 = vmatprep.mubr.f32.mxu0 0.0
    %283 = vmatmul.mubr.f32.gmra.mxu0 %v213
    %v284 = vpop.f32.mrf.mxu0
    %v285 = vadd.f32 %v211, %v284
    %v286 = vpop.f32.mrf.mxu0
    %287 = vmatprep.mubr.f32.mxu0 0.0
    %288 = vmatmul.mubr.f32.gmra.mxu0 %v216
    %v289 = vpop.f32.mrf.mxu0
    %v290 = vadd.f32 %v211, %v289
    %v291 = vpop.f32.mrf.mxu0
    %292 = vdwg.mxu0
    %v293 = vlaneseq
    %v294 = vshrl.u32 %v293, 7
    %v295 = vadd.s32 %v294, 8
    %v296 = vlaneseq
    %v297 = vand.u32 %v296, 127
    %vm298 = vcmp.lt.s32.totalorder %v294, 0
    %v299 = vsub.s32 0, %v294
    %v300 = vsel %vm298, %v299, %v294
    %v301 = vshrl.u32 %v300, 1
    %v302 = vand.u32 %v300, 1
    %v303 = vsub.s32 0, %v302
    %v304 = vsel %vm298, %v303, %v302
    %vm305 = vcmp.lt.s32.totalorder %v295, 0
    %v306 = vsub.s32 0, %v295
    %v307 = vsel %vm305, %v306, %v295
    %v308 = vshrl.u32 %v307, 1
    %v309 = vand.u32 %v307, 1
    %v310 = vsub.s32 0, %v309
    %v311 = vsel %vm305, %v310, %v309
    %vm312 = vcmp.ne.s32.totalorder %v304, 0
    %vm313 = vcmp.ne.s32.totalorder %v311, 0
    %vm314 = vcmp.lt.s32.totalorder %v304, 0
    %vm315 = vcmp.lt.s32.totalorder %v311, 0
    %vm316 = vmand %vm314, %vm312
    %vm317 = vmand %vm315, %vm313
    %v318 = vadd.s32 %v304, 2
    %v319 = vadd.s32 %v311, 2
    %v320 = vsel %vm316, %v318, %v304
    %v321 = vsel %vm317, %v319, %v311
    %vm322 = vcmp.lt.s32.totalorder %v297, 0
    %v323 = vsub.s32 0, %v297
    %v324 = vsel %vm322, %v323, %v297
    %v325 = vshrl.u32 %v324, 1
    %v326 = vand.u32 %v324, 1
    %v327 = vsub.s32 0, %v326
    %v328 = vsel %vm322, %v327, %v326
    %vm329 = vcmp.ne.s32.totalorder %v328, 0
    %vm330 = vcmp.lt.s32.totalorder %v328, 0
    %vm331 = vmand %vm330, %vm329
    %v332 = vadd.s32 %v328, 2
    %v333 = vsel %vm331, %v332, %v328
    %vm334 = vcmp.eq.s32.totalorder %v320, %v333
    %vm335 = vcmp.eq.s32.totalorder %v321, %v333
    %vm336 = vcmask 39936
    %v338 = vsel %vm336, %v109, 0
    %v341 = vsel %vm336, %v114, 0
    %v344 = vsel %vm336, %v197, 0
    %v347 = vsel %vm336, %v202, 0
    %349 = vmatprep.subr.mxu0 0.0
    %350 = vmatpush1.xpose.msra.mxu0 0.0
    %351 = vmatprep.subr.mxu0 0.0
    %352 = vmatpush1.xpose.msra.mxu0 0.0
    %353 = vmatprep.subr.mxu0 0.0
    %354 = vmatpush1.xpose.msra.mxu0 0.0
    %355 = vmatprep.subr.mxu0 0.0
    %356 = vmatpush1.xpose.msra.mxu0 0.0
    %357 = vmatprep.subr.mxu0 0.0
    %358 = vmatpush1.xpose.msra.mxu0 0.0
    %359 = vmatprep.subr.mxu0 0.0
    %360 = vmatpush1.xpose.msra.mxu0 0.0
    %361 = vmatprep.subr.mxu0 0.0
    %362 = vmatpush1.xpose.msra.mxu0 0.0
    %363 = vmatprep.subr.mxu0 0.0
    %364 = vmatpush1.xpose.msra.mxu0 0.0
    %365 = vmatprep.subr.mxu0 0.0
    %366 = vmatpush1.xpose.msra.mxu0 0.0
    %367 = vmatprep.subr.mxu0 0.0
    %368 = vmatpush1.xpose.msra.mxu0 0.0
    %369 = vmatprep.subr.mxu0 0.0
    %370 = vmatpush1.xpose.msra.mxu0 0.0
    %371 = vmatprep.subr.mxu0 0.0
    %372 = vmatpush1.xpose.msra.mxu0 0.0
    %373 = vmatprep.subr.mxu0 0.0
    %374 = vmatpush1.xpose.msra.mxu0 0.0
    %375 = vmatprep.subr.mxu0 0.0
    %376 = vmatpush1.xpose.msra.mxu0 0.0
    %377 = vmatprep.subr.mxu0 0.0
    %378 = vmatpush1.xpose.msra.mxu0 %v347
    %379 = vmatprep.subr.mxu0 0.0
    %380 = vmatpush1.xpose.msra.mxu0 %v344
    %381 = vmatprep.subr.mxu0 0.0
    %382 = vmatpush2.xpose.msra.mxu0 0.0
    %383 = vmatprep.subr.mxu0 0.0
    %384 = vmatpush2.xpose.msra.mxu0 0.0
    %385 = vmatprep.subr.mxu0 0.0
    %386 = vmatpush2.xpose.msra.mxu0 0.0
    %387 = vmatprep.subr.mxu0 0.0
    %388 = vmatpush2.xpose.msra.mxu0 0.0
    %389 = vmatprep.subr.mxu0 0.0
    %390 = vmatpush2.xpose.msra.mxu0 0.0
    %391 = vmatprep.subr.mxu0 0.0
    %392 = vmatpush2.xpose.msra.mxu0 0.0
    %393 = vmatprep.subr.mxu0 0.0
    %394 = vmatpush2.xpose.msra.mxu0 0.0
    %395 = vmatprep.subr.mxu0 0.0
    %396 = vmatpush2.xpose.msra.mxu0 0.0
    %397 = vmatprep.subr.mxu0 0.0
    %398 = vmatpush2.xpose.msra.mxu0 0.0
    %399 = vmatprep.subr.mxu0 0.0
    %400 = vmatpush2.xpose.msra.mxu0 0.0
    %401 = vmatprep.subr.mxu0 0.0
    %402 = vmatpush2.xpose.msra.mxu0 0.0
    %403 = vmatprep.subr.mxu0 0.0
    %404 = vmatpush2.xpose.msra.mxu0 0.0
    %405 = vmatprep.subr.mxu0 0.0
    %406 = vmatpush2.xpose.msra.mxu0 0.0
    %407 = vmatprep.subr.mxu0 0.0
    %408 = vmatpush2.xpose.msra.mxu0 0.0
    %409 = vmatprep.subr.mxu0 0.0
    %410 = vmatpush2.xpose.msra.mxu0 0.0
    %411 = vmatprep.subr.mxu0 0.0
    %412 = vmatpush2.xpose.msra.mxu0 0.0
    %413 = vmatprep.mubr.f32.mxu0 0.0
    %414 = vmatmul.mubr.f32.gmra.mxu0 %v338
    %v415 = vpop.f32.mrf.mxu0
    %v416 = vadd.f32 0.0, %v415
    %v417 = vpop.f32.mrf.mxu0
    %418 = vmatprep.mubr.f32.mxu0 0.0
    %419 = vmatmul.mubr.f32.gmra.mxu0 %v341
    %v420 = vpop.f32.mrf.mxu0
    %v421 = vadd.f32 0.0, %v420
    %v422 = vpop.f32.mrf.mxu0
    %423 = vdwg.mxu0
    %v424 = vsel %vm334, %v416, -inf
    %v425 = vsel %vm335, %v421, -inf
    %v426 = vsel %vm35, %v424, -inf
    %427 = vmax.xlane.f32.xlu0 %v426
    %v428 = vpop.xlane.xlu0 %427
    %v429 = vsel %vm35, %v425, -inf
    %430 = vmax.xlane.f32.xlu0 %v429
    %v431 = vpop.xlane.xlu0 %430
    %v432 = vsub.f32 %v424, %v428
    %v433 = vsub.f32 %v425, %v431
    %v434 = vmul.f32 %v432, 1.442695
    %v435 = vpow.pop %v434
    %v436 = vmul.f32 %v433, 1.442695
    %v437 = vpow.pop %v436
    %v438 = vsel %vm35, %v435, 0.0
    %439 = vadd.xlane.f32.xlu0 %v438
    %v440 = vpop.xlane.xlu0 %439
    %v441 = vsel %vm35, %v437, 0.0
    %442 = vadd.xlane.f32.xlu0 %v441
    %v443 = vpop.xlane.xlu0 %442
    %v444 = vrcp.pop %v440
    %v445 = vrcp.pop %v443
    %v446 = vmul.f32 %v435, %v444
    %v447 = vmul.f32 %v437, %v445
    %v449 = vsel %vm35, %v446, 0
    %v452 = vsel %vm35, %v447, 0
    %454 = vmatprep.subr.mxu0 0.0
    %455 = vmatpush1.msra.mxu0 0.0
    %456 = vmatprep.subr.mxu0 0.0
    %457 = vmatpush1.msra.mxu0 0.0
    %458 = vmatprep.subr.mxu0 0.0
    %459 = vmatpush1.msra.mxu0 0.0
    %460 = vmatprep.subr.mxu0 0.0
    %461 = vmatpush1.msra.mxu0 0.0
    %462 = vmatprep.subr.mxu0 0.0
    %463 = vmatpush1.msra.mxu0 0.0
    %464 = vmatprep.subr.mxu0 0.0
    %465 = vmatpush1.msra.mxu0 0.0
    %466 = vmatprep.subr.mxu0 0.0
    %467 = vmatpush1.msra.mxu0 0.0
    %468 = vmatprep.subr.mxu0 0.0
    %469 = vmatpush1.msra.mxu0 0.0
    %470 = vmatprep.subr.mxu0 0.0
    %471 = vmatpush1.msra.mxu0 0.0
    %472 = vmatprep.subr.mxu0 0.0
    %473 = vmatpush1.msra.mxu0 0.0
    %474 = vmatprep.subr.mxu0 0.0
    %475 = vmatpush1.msra.mxu0 0.0
    %476 = vmatprep.subr.mxu0 0.0
    %477 = vmatpush1.msra.mxu0 0.0
    %478 = vmatprep.subr.mxu0 0.0
    %479 = vmatpush1.msra.mxu0 0.0
    %480 = vmatprep.subr.mxu0 0.0
    %481 = vmatpush1.msra.mxu0 0.0
    %482 = vmatprep.subr.mxu0 0.0
    %483 = vmatpush1.msra.mxu0 %v290
    %484 = vmatprep.subr.mxu0 0.0
    %485 = vmatpush1.msra.mxu0 %v285
    %486 = vmatprep.subr.mxu0 0.0
    %487 = vmatpush2.msra.mxu0 0.0
    %488 = vmatprep.subr.mxu0 0.0
    %489 = vmatpush2.msra.mxu0 0.0
    %490 = vmatprep.subr.mxu0 0.0
    %491 = vmatpush2.msra.mxu0 0.0
    %492 = vmatprep.subr.mxu0 0.0
    %493 = vmatpush2.msra.mxu0 0.0
    %494 = vmatprep.subr.mxu0 0.0
    %495 = vmatpush2.msra.mxu0 0.0
    %496 = vmatprep.subr.mxu0 0.0
    %497 = vmatpush2.msra.mxu0 0.0
    %498 = vmatprep.subr.mxu0 0.0
    %499 = vmatpush2.msra.mxu0 0.0
    %500 = vmatprep.subr.mxu0 0.0
    %501 = vmatpush2.msra.mxu0 0.0
    %502 = vmatprep.subr.mxu0 0.0
    %503 = vmatpush2.msra.mxu0 0.0
    %504 = vmatprep.subr.mxu0 0.0
    %505 = vmatpush2.msra.mxu0 0.0
    %506 = vmatprep.subr.mxu0 0.0
    %507 = vmatpush2.msra.mxu0 0.0
    %508 = vmatprep.subr.mxu0 0.0
    %509 = vmatpush2.msra.mxu0 0.0
    %510 = vmatprep.subr.mxu0 0.0
    %511 = vmatpush2.msra.mxu0 0.0
    %512 = vmatprep.subr.mxu0 0.0
    %513 = vmatpush2.msra.mxu0 0.0
    %514 = vmatprep.subr.mxu0 0.0
    %515 = vmatpush2.msra.mxu0 0.0
    %516 = vmatprep.subr.mxu0 0.0
    %517 = vmatpush2.msra.mxu0 0.0
    %518 = vmatprep.mubr.f32.mxu0 0.0
    %519 = vmatmul.mubr.f32.gmra.mxu0 %v449
    %v520 = vpop.f32.mrf.mxu0
    %v521 = vadd.f32 0.0, %v520
    %v522 = vpop.f32.mrf.mxu0
    %523 = vmatprep.mubr.f32.mxu0 0.0
    %524 = vmatmul.mubr.f32.gmra.mxu0 %v452
    %v525 = vpop.f32.mrf.mxu0
    %v526 = vadd.f32 0.0, %v525
    %v527 = vpop.f32.mrf.mxu0
    %528 = vdwg.mxu0
    %529 = vrot.lane.b32.xlu0 %v109, 123
    %v530 = vpop.permute.xlu0 %529
    %531 = vrot.lane.b32.xlu0 %v114, 123
    %v532 = vpop.permute.xlu0 %531
    %533 = vrot.lane.b32.xlu0 %v197, 123
    %v534 = vpop.permute.xlu0 %533
    %535 = vrot.lane.b32.xlu0 %v202, 123
    %v536 = vpop.permute.xlu0 %535
    %v537 = vsel %vm336, %v530, 0
    %v539 = vsel %vm336, %v532, 0
    %v541 = vsel %vm336, %v534, 0
    %v543 = vsel %vm336, %v536, 0
    %545 = vmatprep.subr.mxu0 0.0
    %546 = vmatpush1.xpose.msra.mxu0 0.0
    %547 = vmatprep.subr.mxu0 0.0
    %548 = vmatpush1.xpose.msra.mxu0 0.0
    %549 = vmatprep.subr.mxu0 0.0
    %550 = vmatpush1.xpose.msra.mxu0 0.0
    %551 = vmatprep.subr.mxu0 0.0
    %552 = vmatpush1.xpose.msra.mxu0 0.0
    %553 = vmatprep.subr.mxu0 0.0
    %554 = vmatpush1.xpose.msra.mxu0 0.0
    %555 = vmatprep.subr.mxu0 0.0
    %556 = vmatpush1.xpose.msra.mxu0 0.0
    %557 = vmatprep.subr.mxu0 0.0
    %558 = vmatpush1.xpose.msra.mxu0 0.0
    %559 = vmatprep.subr.mxu0 0.0
    %560 = vmatpush1.xpose.msra.mxu0 0.0
    %561 = vmatprep.subr.mxu0 0.0
    %562 = vmatpush1.xpose.msra.mxu0 0.0
    %563 = vmatprep.subr.mxu0 0.0
    %564 = vmatpush1.xpose.msra.mxu0 0.0
    %565 = vmatprep.subr.mxu0 0.0
    %566 = vmatpush1.xpose.msra.mxu0 0.0
    %567 = vmatprep.subr.mxu0 0.0
    %568 = vmatpush1.xpose.msra.mxu0 0.0
    %569 = vmatprep.subr.mxu0 0.0
    %570 = vmatpush1.xpose.msra.mxu0 0.0
    %571 = vmatprep.subr.mxu0 0.0
    %572 = vmatpush1.xpose.msra.mxu0 0.0
    %573 = vmatprep.subr.mxu0 0.0
    %574 = vmatpush1.xpose.msra.mxu0 %v543
    %575 = vmatprep.subr.mxu0 0.0
    %576 = vmatpush1.xpose.msra.mxu0 %v541
    %577 = vmatprep.subr.mxu0 0.0
    %578 = vmatpush2.xpose.msra.mxu0 0.0
    %579 = vmatprep.subr.mxu0 0.0
    %580 = vmatpush2.xpose.msra.mxu0 0.0
    %581 = vmatprep.subr.mxu0 0.0
    %582 = vmatpush2.xpose.msra.mxu0 0.0
    %583 = vmatprep.subr.mxu0 0.0
    %584 = vmatpush2.xpose.msra.mxu0 0.0
    %585 = vmatprep.subr.mxu0 0.0
    %586 = vmatpush2.xpose.msra.mxu0 0.0
    %587 = vmatprep.subr.mxu0 0.0
    %588 = vmatpush2.xpose.msra.mxu0 0.0
    %589 = vmatprep.subr.mxu0 0.0
    %590 = vmatpush2.xpose.msra.mxu0 0.0
    %591 = vmatprep.subr.mxu0 0.0
    %592 = vmatpush2.xpose.msra.mxu0 0.0
    %593 = vmatprep.subr.mxu0 0.0
    %594 = vmatpush2.xpose.msra.mxu0 0.0
    %595 = vmatprep.subr.mxu0 0.0
    %596 = vmatpush2.xpose.msra.mxu0 0.0
    %597 = vmatprep.subr.mxu0 0.0
    %598 = vmatpush2.xpose.msra.mxu0 0.0
    %599 = vmatprep.subr.mxu0 0.0
    %600 = vmatpush2.xpose.msra.mxu0 0.0
    %601 = vmatprep.subr.mxu0 0.0
    %602 = vmatpush2.xpose.msra.mxu0 0.0
    %603 = vmatprep.subr.mxu0 0.0
    %604 = vmatpush2.xpose.msra.mxu0 0.0
    %605 = vmatprep.subr.mxu0 0.0
    %606 = vmatpush2.xpose.msra.mxu0 0.0
    %607 = vmatprep.subr.mxu0 0.0
    %608 = vmatpush2.xpose.msra.mxu0 0.0
    %609 = vmatprep.mubr.f32.mxu0 0.0
    %610 = vmatmul.mubr.f32.gmra.mxu0 %v537
    %v611 = vpop.f32.mrf.mxu0
    %v612 = vadd.f32 0.0, %v611
    %v613 = vpop.f32.mrf.mxu0
    %614 = vmatprep.mubr.f32.mxu0 0.0
    %615 = vmatmul.mubr.f32.gmra.mxu0 %v539
    %v616 = vpop.f32.mrf.mxu0
    %v617 = vadd.f32 0.0, %v616
    %v618 = vpop.f32.mrf.mxu0
    %619 = vdwg.mxu0
    %v620 = vsel %vm334, %v612, -inf
    %v621 = vsel %vm335, %v617, -inf
    %v622 = vsel %vm35, %v620, -inf
    %623 = vmax.xlane.f32.xlu0 %v622
    %v624 = vpop.xlane.xlu0 %623
    %v625 = vsel %vm35, %v621, -inf
    %626 = vmax.xlane.f32.xlu0 %v625
    %v627 = vpop.xlane.xlu0 %626
    %v628 = vsub.f32 %v620, %v624
    %v629 = vsub.f32 %v621, %v627
    %v630 = vmul.f32 %v628, 1.442695
    %v631 = vpow.pop %v630
    %v632 = vmul.f32 %v629, 1.442695
    %v633 = vpow.pop %v632
    %v634 = vsel %vm35, %v631, 0.0
    %635 = vadd.xlane.f32.xlu0 %v634
    %v636 = vpop.xlane.xlu0 %635
    %v637 = vsel %vm35, %v633, 0.0
    %638 = vadd.xlane.f32.xlu0 %v637
    %v639 = vpop.xlane.xlu0 %638
    %v640 = vrcp.pop %v636
    %v641 = vrcp.pop %v639
    %v642 = vmul.f32 %v631, %v640
    %v643 = vmul.f32 %v633, %v641
    %646 = vrot.lane.b32.xlu0 %v285, 123
    %v647 = vpop.permute.xlu0 %646
    %648 = vrot.lane.b32.xlu0 %v290, 123
    %v649 = vpop.permute.xlu0 %648
    %v653 = vsel %vm35, %v642, 0
    %v656 = vsel %vm35, %v643, 0
    %658 = vmatprep.subr.mxu0 0.0
    %659 = vmatpush1.msra.mxu0 0.0
    %660 = vmatprep.subr.mxu0 0.0
    %661 = vmatpush1.msra.mxu0 0.0
    %662 = vmatprep.subr.mxu0 0.0
    %663 = vmatpush1.msra.mxu0 0.0
    %664 = vmatprep.subr.mxu0 0.0
    %665 = vmatpush1.msra.mxu0 0.0
    %666 = vmatprep.subr.mxu0 0.0
    %667 = vmatpush1.msra.mxu0 0.0
    %668 = vmatprep.subr.mxu0 0.0
    %669 = vmatpush1.msra.mxu0 0.0
    %670 = vmatprep.subr.mxu0 0.0
    %671 = vmatpush1.msra.mxu0 0.0
    %672 = vmatprep.subr.mxu0 0.0
    %673 = vmatpush1.msra.mxu0 0.0
    %674 = vmatprep.subr.mxu0 0.0
    %675 = vmatpush1.msra.mxu0 0.0
    %676 = vmatprep.subr.mxu0 0.0
    %677 = vmatpush1.msra.mxu0 0.0
    %678 = vmatprep.subr.mxu0 0.0
    %679 = vmatpush1.msra.mxu0 0.0
    %680 = vmatprep.subr.mxu0 0.0
    %681 = vmatpush1.msra.mxu0 0.0
    %682 = vmatprep.subr.mxu0 0.0
    %683 = vmatpush1.msra.mxu0 0.0
    %684 = vmatprep.subr.mxu0 0.0
    %685 = vmatpush1.msra.mxu0 0.0
    %686 = vmatprep.subr.mxu0 0.0
    %687 = vmatpush1.msra.mxu0 %v649
    %688 = vmatprep.subr.mxu0 0.0
    %689 = vmatpush1.msra.mxu0 %v647
    %690 = vmatprep.subr.mxu0 0.0
    %691 = vmatpush2.msra.mxu0 0.0
    %692 = vmatprep.subr.mxu0 0.0
    %693 = vmatpush2.msra.mxu0 0.0
    %694 = vmatprep.subr.mxu0 0.0
    %695 = vmatpush2.msra.mxu0 0.0
    %696 = vmatprep.subr.mxu0 0.0
    %697 = vmatpush2.msra.mxu0 0.0
    %698 = vmatprep.subr.mxu0 0.0
    %699 = vmatpush2.msra.mxu0 0.0
    %700 = vmatprep.subr.mxu0 0.0
    %701 = vmatpush2.msra.mxu0 0.0
    %702 = vmatprep.subr.mxu0 0.0
    %703 = vmatpush2.msra.mxu0 0.0
    %704 = vmatprep.subr.mxu0 0.0
    %705 = vmatpush2.msra.mxu0 0.0
    %706 = vmatprep.subr.mxu0 0.0
    %707 = vmatpush2.msra.mxu0 0.0
    %708 = vmatprep.subr.mxu0 0.0
    %709 = vmatpush2.msra.mxu0 0.0
    %710 = vmatprep.subr.mxu0 0.0
    %711 = vmatpush2.msra.mxu0 0.0
    %712 = vmatprep.subr.mxu0 0.0
    %713 = vmatpush2.msra.mxu0 0.0
    %714 = vmatprep.subr.mxu0 0.0
    %715 = vmatpush2.msra.mxu0 0.0
    %716 = vmatprep.subr.mxu0 0.0
    %717 = vmatpush2.msra.mxu0 0.0
    %718 = vmatprep.subr.mxu0 0.0
    %719 = vmatpush2.msra.mxu0 0.0
    %720 = vmatprep.subr.mxu0 0.0
    %721 = vmatpush2.msra.mxu0 0.0
    %722 = vmatprep.mubr.f32.mxu0 0.0
    %723 = vmatmul.mubr.f32.gmra.mxu0 %v653
    %v724 = vpop.f32.mrf.mxu0
    %v725 = vadd.f32 0.0, %v724
    %v726 = vpop.f32.mrf.mxu0
    %727 = vmatprep.mubr.f32.mxu0 0.0
    %728 = vmatmul.mubr.f32.gmra.mxu0 %v656
    %v729 = vpop.f32.mrf.mxu0
    %v730 = vadd.f32 0.0, %v729
    %v731 = vpop.f32.mrf.mxu0
    %732 = vdwg.mxu0
    %735 = vrot.lane.b32.xlu0 %v725, 5
    %v736 = vpop.permute.xlu0 %735
    %737 = vrot.lane.b32.xlu0 %v730, 5
    %v738 = vpop.permute.xlu0 %737
    %v741 = vsel %vm336, %v521, %v736
    %v742 = vsel %vm336, %v526, %v738
    %v743 = vlaneseq
    %v744 = vshrl.u32 %v743, 7
    %v745 = vsub.s32 5, %v744
    %v746 = vrot.slane %v28, %v745
    %vm749 = vcmask 1044480
    %v750 = vrot.slane %v27, 3
    %v751 = vrot.slane %v28, 3
    %v752 = vsel %vm749, %v750, %v751
    %vm754 = vcmask 80896
    %v756 = vsel %vm754, %v741, 0
    %v759 = vsel %vm754, %v742, 0
    %vm761 = vcmask 1041408
    %v762 = vsel %vm761, %v751, 0
    %764 = vmatprep.subr.mxu0 0.0
    %765 = vmatpush1.msra.mxu0 0.0
    %766 = vmatprep.subr.mxu0 0.0
    %767 = vmatpush1.msra.mxu0 0.0
    %768 = vmatprep.subr.mxu0 0.0
    %769 = vmatpush1.msra.mxu0 0.0
    %770 = vmatprep.subr.mxu0 0.0
    %771 = vmatpush1.msra.mxu0 0.0
    %772 = vmatprep.subr.mxu0 0.0
    %773 = vmatpush1.msra.mxu0 0.0
    %774 = vmatprep.subr.mxu0 0.0
    %775 = vmatpush1.msra.mxu0 0.0
    %776 = vmatprep.subr.mxu0 0.0
    %777 = vmatpush1.msra.mxu0 0.0
    %778 = vmatprep.subr.mxu0 0.0
    %779 = vmatpush1.msra.mxu0 0.0
    %780 = vmatprep.subr.mxu0 0.0
    %781 = vmatpush1.msra.mxu0 0.0
    %782 = vmatprep.subr.mxu0 0.0
    %783 = vmatpush1.msra.mxu0 0.0
    %784 = vmatprep.subr.mxu0 0.0
    %785 = vmatpush1.msra.mxu0 0.0
    %786 = vmatprep.subr.mxu0 0.0
    %787 = vmatpush1.msra.mxu0 0.0
    %788 = vmatprep.subr.mxu0 0.0
    %789 = vmatpush1.msra.mxu0 0.0
    %790 = vmatprep.subr.mxu0 0.0
    %791 = vmatpush1.msra.mxu0 0.0
    %792 = vmatprep.subr.mxu0 0.0
    %793 = vmatpush1.msra.mxu0 %v762
    %794 = vmatprep.subr.mxu0 0.0
    %795 = vmatpush1.msra.mxu0 %v752
    %796 = vmatprep.subr.mxu0 0.0
    %797 = vmatpush2.msra.mxu0 0.0
    %798 = vmatprep.subr.mxu0 0.0
    %799 = vmatpush2.msra.mxu0 0.0
    %800 = vmatprep.subr.mxu0 0.0
    %801 = vmatpush2.msra.mxu0 0.0
    %802 = vmatprep.subr.mxu0 0.0
    %803 = vmatpush2.msra.mxu0 0.0
    %804 = vmatprep.subr.mxu0 0.0
    %805 = vmatpush2.msra.mxu0 0.0
    %806 = vmatprep.subr.mxu0 0.0
    %807 = vmatpush2.msra.mxu0 0.0
    %808 = vmatprep.subr.mxu0 0.0
    %809 = vmatpush2.msra.mxu0 0.0
    %810 = vmatprep.subr.mxu0 0.0
    %811 = vmatpush2.msra.mxu0 0.0
    %812 = vmatprep.subr.mxu0 0.0
    %813 = vmatpush2.msra.mxu0 0.0
    %814 = vmatprep.subr.mxu0 0.0
    %815 = vmatpush2.msra.mxu0 0.0
    %816 = vmatprep.subr.mxu0 0.0
    %817 = vmatpush2.msra.mxu0 0.0
    %818 = vmatprep.subr.mxu0 0.0
    %819 = vmatpush2.msra.mxu0 0.0
    %820 = vmatprep.subr.mxu0 0.0
    %821 = vmatpush2.msra.mxu0 0.0
    %822 = vmatprep.subr.mxu0 0.0
    %823 = vmatpush2.msra.mxu0 0.0
    %824 = vmatprep.subr.mxu0 0.0
    %825 = vmatpush2.msra.mxu0 0.0
    %826 = vmatprep.subr.mxu0 0.0
    %827 = vmatpush2.msra.mxu0 0.0
    %828 = vmatprep.mubr.f32.mxu0 0.0
    %829 = vmatmul.mubr.f32.gmra.mxu0 %v756
    %v830 = vpop.f32.mrf.mxu0
    %v831 = vadd.f32 %v746, %v830
    %v832 = vpop.f32.mrf.mxu0
    %833 = vmatprep.mubr.f32.mxu0 0.0
    %834 = vmatmul.mubr.f32.gmra.mxu0 %v759
    %v835 = vpop.f32.mrf.mxu0
    %v836 = vadd.f32 %v746, %v835
    %v837 = vpop.f32.mrf.mxu0
    %838 = vdwg.mxu0
    %839 = vst.msk [vmem:[#allocation2] sm:$0xff] %vm754, %v831
    %840 = vst.msk [vmem:[#allocation2 + $0x8] sm:$0xff] %vm754, %v836
    // Predicated region
    $region22: #{taa_spatial_pallas.1} parent=1 // pred_check
      _
    $region23: #{taa_spatial_pallas.1} parent=1 // pred_check_branch
      %842 = sbr.rel (0) target = $region25
    $region24: #{taa_spatial_pallas.1} parent=1 // pred_region
      %s844 = ssub.s32 256, 256
      %845 = vsyncadd [#allocation3], %s844
      %s846 = sshll.u32 [#allocation2], 4
      %s847 = int_to_ptr.vmem [resolvable:$true] %s846
      %852 = dma.vmem_to_hbm [thread:$0]  %s847, 256, %s5, [#allocation3], 128, 128, 8
    $region25: #{taa_spatial_pallas.1} parent=1 // pred_fallthru
      _
    // Predicated region
    $region26: #{taa_spatial_pallas.1} parent=1 // pred_check
      _
    $region27: #{taa_spatial_pallas.1} parent=1 // pred_check_branch
      %854 = sbr.rel (0) target = $region29
    $region28: #{taa_spatial_pallas.1} parent=1 // pred_region
      %855 = dma.done [#allocation3], 256
    $region29: #{taa_spatial_pallas.1} parent=1 // pred_fallthru
      _
    %856 = vsyncpa [#allocation3], 1

</llo_original>
